<compile_context>
chip_gen: v5e
topology: v5e:2x2
jax: 0.10.0
libtpu: 0.0.40
codegen_flags: <defaults>
</compile_context>

<pallas_src>
import jax
import jax.numpy as jnp
from jax.experimental import pallas as pl
from jax.experimental.pallas import tpu as pltpu


def _round_up(n, m):
    return ((n + m - 1) // m) * m


def _mlp_kernel(x_ref, w1_ref, w2_ref, w3_ref, cols_ref, b4_ref, o_ref):
    # x_ref:    [bt, in_dim]  f32 streamed batch tile (cast to bf16 HERE, in
    #           VMEM, instead of materializing a bf16 copy of x in HBM).
    # w1_ref:   [hpad, in_dim] bf16  (PyTorch [out, in] layout, hidden padded)
    # w2_ref:   [hpad, hpad]   bf16
    # w3_ref:   [hpad, hpad]   bf16
    # cols_ref: [hpad, 4]      f32   packed columns: b1 | b2 | b3 | w4
    # b4_ref:   (1, 1)         f32   scalar bias in SMEM
    # o_ref:    [1, bt]        f32   lane-dense output row (batch on lanes)
    x = x_ref[...].astype(jnp.bfloat16)
    cols = cols_ref[...]
    b1, b2, b3, w4 = cols[:, 0:1], cols[:, 1:2], cols[:, 2:3], cols[:, 3:4]

    # Layer 1: contract over in_dim; batch moves onto the lane axis so the
    # activations stay [hidden, batch] through the whole network.
    # TODO(synk): if the caller can supply x already as [in_dim, B] bf16 this
    # becomes a plain jnp.dot with lane-dense x loads; the PyTorch [B, in_dim]
    # f32 interface is kept, so Mosaic may transpose the small x tile on-chip.
    h = jnp.einsum("hd,bd->hb", w1_ref[...], x,
                   preferred_element_type=jnp.float32)
    h = jnp.maximum(h + b1, 0.0).astype(jnp.bfloat16)

    # Layers 2/3: [hpad, hpad] @ [hpad, bt] with f32 MXU accumulation.
    h = jnp.dot(w2_ref[...], h, preferred_element_type=jnp.float32)
    h = jnp.maximum(h + b2, 0.0).astype(jnp.bfloat16)

    h = jnp.dot(w3_ref[...], h, preferred_element_type=jnp.float32)
    h = jnp.maximum(h + b3, 0.0)                 # keep f32 for the epilogue

    # Layer 4 (out_features == 1): VPU multiply + cross-sublane reduce instead
    # of a 1-column MXU pass; result is already a lane-dense [1, bt] row.
    out_row = jnp.sum(h * w4, axis=0, keepdims=True)
    o_ref[...] = (out_row + b4_ref[0, 0]).astype(o_ref.dtype)


def _choose_tiling(B):
    """Return (padded_B, batch_tile).  Batch is padded to a multiple of 128 so
    the output row is lane-dense; prefer the largest 128*2^k tile that yields
    >= 4 grid steps (>= 2 per v7x TensorCore), then >= 2 steps, then 1."""
    Bp = _round_up(max(B, 1), 128)
    for min_steps in (4, 2):
        for t in (1024, 512, 256, 128):
            if Bp % t == 0 and Bp // t >= min_steps:
                return Bp, t
    return Bp, Bp


def _vmem_ceiling_bytes():
    cap = 64 << 20                        # assume smallest per-core VMEM (v7x)
    try:
        info = pltpu.get_tpu_info()
        cap = int(getattr(info, "vmem_capacity_bytes", cap))
    except Exception:
        pass
    return cap - (8 << 20)                # keep >=8 MiB headroom for Mosaic


def _vmem_bytes_estimate(bt, in_dim, hpad, x_itemsize, param_bytes):
    lane = lambda n: _round_up(n, 128)
    x_tile = bt * lane(in_dim) * x_itemsize            # streamed x tile
    out_tile = 8 * lane(bt) * 4                        # [1, bt] row, sublane-padded
    hidden_f32 = hpad * bt * 4
    live = (bt * lane(in_dim) * 2                      # in-kernel bf16 copy of x
            + 3 * hidden_f32)                          # f32/bf16 hidden + epilogue temps
    return (2 * (x_tile + out_tile)                    # double-buffered streamed tiles
            + 2 * param_bytes                          # grid-invariant weights (2x budget)
            + live
            + (2 << 20))                               # Mosaic internal scratch margin


def _build_call(Bp, in_dim, hpad, bt, x_dtype, vmem_limit, param_bytes):
    grid = (Bp // bt,)
    in_specs = [
        pl.BlockSpec((bt, in_dim), lambda i: (i, 0)),        # x (streamed f32)
        pl.BlockSpec((hpad, in_dim), lambda i: (0, 0)),      # w1 (resident)
        pl.BlockSpec((hpad, hpad), lambda i: (0, 0)),        # w2 (resident)
        pl.BlockSpec((hpad, hpad), lambda i: (0, 0)),        # w3 (resident)
        pl.BlockSpec((hpad, 4), lambda i: (0, 0)),           # packed b1|b2|b3|w4
        pl.BlockSpec((1, 1), lambda i: (0, 0),
                     memory_space=pltpu.MemorySpace.SMEM),   # b4 scalar
    ]
    out_specs = pl.BlockSpec((1, bt), lambda i: (0, i))      # lane-dense output

    flops = 2 * Bp * (in_dim * hpad + 2 * hpad * hpad + hpad)
    bytes_accessed = (Bp * in_dim * jnp.dtype(x_dtype).itemsize
                      + param_bytes + Bp * 4)

    cp_kwargs = {}
    if vmem_limit is not None:
        cp_kwargs["vmem_limit_bytes"] = int(vmem_limit)

    return pl.pallas_call(
        _mlp_kernel,
        out_shape=jax.ShapeDtypeStruct((1, Bp), jnp.float32),
        grid=grid,
        in_specs=in_specs,
        out_specs=out_specs,
        compiler_params=pltpu.CompilerParams(
            dimension_semantics=("parallel",), **cp_kwargs),
        cost_estimate=pl.CostEstimate(flops=flops, transcendentals=0,
                                      bytes_accessed=bytes_accessed),
    )


def domain_discriminator(x, prepared_params, *, batch_tile=None):
    """Fused forward pass.  x: [B, in_dim] float (f32 or bf16, PyTorch layout);
    prepared_params from prepare_params()."""
    B, in_dim = x.shape
    w1, w2, w3, cols, b4 = prepared_params
    hpad = w1.shape[0]
    assert w1.shape[1] == in_dim

    Bp, auto_tile = _choose_tiling(B)
    bt = auto_tile if batch_tile is None else batch_tile
    assert Bp % bt == 0 and (bt % 128 == 0 or bt == Bp), \
        "batch_tile must divide the padded batch and be a multiple of 128"

    x_itemsize = jnp.dtype(x.dtype).itemsize
    param_bytes = sum(int(p.size) * jnp.dtype(p.dtype).itemsize
                      for p in prepared_params)

    ceiling = _vmem_ceiling_bytes()
    # Shrink the batch tile until the whole working set fits the smallest VMEM.
    while (_vmem_bytes_estimate(bt, in_dim, hpad, x_itemsize, param_bytes) > ceiling
           and bt > 128 and (bt // 2) % 128 == 0 and Bp % (bt // 2) == 0):
        bt //= 2
    est = _vmem_bytes_estimate(bt, in_dim, hpad, x_itemsize, param_bytes)
    if est > ceiling:
        # TODO(synk): for very large in_dim keep w2/w3 in HBM and add an
        # 'arbitrary' K grid axis (blocked contraction) instead of failing.
        raise ValueError(
            f"DomainDiscriminator weights (~{param_bytes / 2**20:.1f} MiB, "
            f"budgeted 2x resident) exceed the VMEM ceiling "
            f"({ceiling / 2**20:.1f} MiB)")
    # Only override the compiler's default scoped-VMEM limit when the accurate
    # estimate needs more than the most conservative default (16 MiB, v5e).
    vmem_limit = min(est, ceiling) if est > (16 << 20) else None

    if Bp != B:
        x = jnp.pad(x, ((0, Bp - B), (0, 0)))   # zero rows: exact, sliced below

    call = _build_call(Bp, in_dim, hpad, bt, x.dtype, vmem_limit, param_bytes)
    out_row = call(x, w1, w2, w3, cols, b4)     # (1, Bp) f32, lane-dense
    return out_row[0, :B].reshape(B, 1).astype(x.dtype)


def init_params(key, in_dim):
    """PyTorch nn.Linear-style init in PyTorch [out_features, in_features] layout."""
    hidden = in_dim // 2
    dims = [(hidden, in_dim), (hidden, hidden), (hidden, hidden), (1, hidden)]
    keys = jax.random.split(key, 2 * len(dims))
    params = []
    for idx, (out_f, in_f) in enumerate(dims):
        bound = 1.0 / (in_f ** 0.5)
        w = jax.random.uniform(keys[2 * idx], (out_f, in_f),
                               minval=-bound, maxval=bound, dtype=jnp.float32)
        b = jax.random.uniform(keys[2 * idx + 1], (out_f,),
                               minval=-bound, maxval=bound, dtype=jnp.float32)
        params.append((w, b))
    return params


def prepare_params(params):
    """Pad hidden up to a multiple of 128 (exact: zero-padded rows/cols stay
    zero through ReLU and out of the w4 reduction), cast matmul weights to
    bf16, and pack the three biases + w4 into one (hpad, 4) f32 block (one
    resident DMA instead of four lane-padded columns)."""
    (w1, b1), (w2, b2), (w3, b3), (w4, b4) = params
    hidden, in_dim = w1.shape
    hpad = _round_up(hidden, 128)

    def pad2(a, rows, cols):
        out = jnp.zeros((rows, cols), a.dtype)
        return out.at[:a.shape[0], :a.shape[1]].set(a)

    w1p = pad2(w1, hpad, in_dim).astype(jnp.bfloat16)
    w2p = pad2(w2, hpad, hpad).astype(jnp.bfloat16)
    w3p = pad2(w3, hpad, hpad).astype(jnp.bfloat16)
    cols = jnp.concatenate([
        pad2(b1.reshape(-1, 1), hpad, 1),
        pad2(b2.reshape(-1, 1), hpad, 1),
        pad2(b3.reshape(-1, 1), hpad, 1),
        pad2(w4.T, hpad, 1),                      # f32 column for the epilogue
    ], axis=1).astype(jnp.float32)
    b4p = b4.reshape(1, 1).astype(jnp.float32)    # scalar, lives in SMEM
    return (w1p, w2p, w3p, cols, b4p)


def reference_forward(x, prepared_params):
    """Pure-jnp forward with numerics matched to the kernel (bf16 weights and
    activations for the matmuls, f32 accumulation, f32 epilogue)."""
    w1, w2, w3, cols, b4 = prepared_params
    b1, b2, b3, w4 = cols[:, 0:1], cols[:, 1:2], cols[:, 2:3], cols[:, 3:4]
    xb = x.astype(jnp.bfloat16)
    h = jnp.einsum("hd,bd->hb", w1, xb, preferred_element_type=jnp.float32)
    h = jnp.maximum(h + b1, 0.0).astype(jnp.bfloat16)
    h = jnp.dot(w2, h, preferred_element_type=jnp.float32)
    h = jnp.maximum(h + b2, 0.0).astype(jnp.bfloat16)
    h = jnp.dot(w3, h, preferred_element_type=jnp.float32)
    h = jnp.maximum(h + b3, 0.0)
    out = jnp.sum(h * w4, axis=0, keepdims=True) + b4[0, 0]
    return out.reshape(-1, 1).astype(x.dtype)


if __name__ == "__main__":
    key = jax.random.PRNGKey(0)
    k_x, k_p = jax.random.split(key)

    B, in_dim = 256, 64                   # hidden_dim = 32 -> padded to 128
    x = jax.random.normal(k_x, (B, in_dim), dtype=jnp.float32)
    params = init_params(k_p, in_dim)
    prepared = prepare_params(params)

    out = domain_discriminator(x, prepared)          # tile=128 -> 2 grid steps
    out = jax.block_until_ready(out)
    ref = reference_forward(x, prepared)
    assert out.shape == (B, 1)
    assert jnp.allclose(out, ref, atol=1e-2, rtol=1e-2), \
        float(jnp.max(jnp.abs(out - ref)))

    # Ragged batch: exercises the pad-to-128 + output-slice path.
    B2 = 200
    x2 = x[:B2]
    out2 = jax.block_until_ready(domain_discriminator(x2, prepared))
    ref2 = reference_forward(x2, prepared)
    assert out2.shape == (B2, 1)
    assert jnp.allclose(out2, ref2, atol=1e-2, rtol=1e-2), \
        float(jnp.max(jnp.abs(out2 - ref2)))

    print("KERNEL_OK")
</pallas_src>

<mosaic_0001>
module attributes {stable_mosaic.version = 11 : i64} {
  func.func @_mlp_kernel(%arg0: i32, %arg1: memref<128x64xf32, #tpu.memory_space<vmem>>, %arg2: memref<128x64xbf16, #tpu.memory_space<vmem>>, %arg3: memref<128x128xbf16, #tpu.memory_space<vmem>>, %arg4: memref<128x128xbf16, #tpu.memory_space<vmem>>, %arg5: memref<128x4xf32, #tpu.memory_space<vmem>>, %arg6: memref<1x1xf32, #tpu.memory_space<smem>>, %arg7: memref<1x128xf32, #tpu.memory_space<vmem>>) attributes {dimension_semantics = [#tpu.dimension_semantics<parallel>], iteration_bounds = array<i64: 2>, scalar_prefetch = 0 : i64, scratch_operands = 0 : i64, tpu.core_type = #tpu.core_type<tc>, window_params = [{transform_indices = @transform_0, window_bounds = array<i64: 128, 64>}, {pipeline_mode = #tpu.pipeline_mode<synchronous>, transform_indices = @transform_1, window_bounds = array<i64: 128, 64>}, {pipeline_mode = #tpu.pipeline_mode<synchronous>, transform_indices = @transform_2, window_bounds = array<i64: 128, 128>}, {pipeline_mode = #tpu.pipeline_mode<synchronous>, transform_indices = @transform_3, window_bounds = array<i64: 128, 128>}, {pipeline_mode = #tpu.pipeline_mode<synchronous>, transform_indices = @transform_4, window_bounds = array<i64: 128, 4>}, {transform_indices = @transform_5, window_bounds = array<i64: 1, 1>}, {transform_indices = @transform_6, window_bounds = array<i64: 1, 128>}]} {
    %c0 = arith.constant 0 : index
    %c0_0 = arith.constant 0 : index
    %0 = vector.load %arg1[%c0, %c0_0] : memref<128x64xf32, #tpu.memory_space<vmem>>, vector<128x64xf32>
    %1 = arith.truncf %0 : vector<128x64xf32> to vector<128x64xbf16>
    %c0_1 = arith.constant 0 : index
    %c0_2 = arith.constant 0 : index
    %2 = vector.load %arg5[%c0_1, %c0_2] : memref<128x4xf32, #tpu.memory_space<vmem>>, vector<128x4xf32>
    %3 = vector.extract_strided_slice %2 {offsets = [0, 0], sizes = [128, 1], strides = [1, 1]} : vector<128x4xf32> to vector<128x1xf32>
    %4 = vector.extract_strided_slice %2 {offsets = [0, 1], sizes = [128, 1], strides = [1, 1]} : vector<128x4xf32> to vector<128x1xf32>
    %5 = vector.extract_strided_slice %2 {offsets = [0, 2], sizes = [128, 1], strides = [1, 1]} : vector<128x4xf32> to vector<128x1xf32>
    %6 = vector.extract_strided_slice %2 {offsets = [0, 3], sizes = [128, 1], strides = [1, 1]} : vector<128x4xf32> to vector<128x1xf32>
    %c0_3 = arith.constant 0 : index
    %c0_4 = arith.constant 0 : index
    %7 = vector.load %arg2[%c0_3, %c0_4] : memref<128x64xbf16, #tpu.memory_space<vmem>>, vector<128x64xbf16>
    "tpu.trace_start"() <{level = 10 : i32, message = "hd,bd->hb"}> : () -> ()
    %cst = arith.constant dense<0.000000e+00> : vector<128x128xf32>
    %8 = tpu.matmul %7, %1, %cst {dimension_numbers = #tpu.dot_dimension_numbers<[1], [1], [0], [0], [0, 0, 1, 0], [], []>} : vector<128x64xbf16>, vector<128x64xbf16>, vector<128x128xf32> -> vector<128x128xf32>
    "tpu.trace_stop"() : () -> ()
    %9 = vector.broadcast %3 : vector<128x1xf32> to vector<128x128xf32>
    %10 = arith.addf %8, %9 : vector<128x128xf32>
    %cst_5 = arith.constant 0.000000e+00 : f32
    %11 = vector.broadcast %cst_5 : f32 to vector<128x128xf32>
    %12 = arith.maximumf %10, %11 : vector<128x128xf32>
    %13 = arith.truncf %12 : vector<128x128xf32> to vector<128x128xbf16>
    %c0_6 = arith.constant 0 : index
    %c0_7 = arith.constant 0 : index
    %14 = vector.load %arg3[%c0_6, %c0_7] : memref<128x128xbf16, #tpu.memory_space<vmem>>, vector<128x128xbf16>
    %cst_8 = arith.constant dense<0.000000e+00> : vector<128x128xf32>
    %15 = tpu.matmul %14, %13, %cst_8 {dimension_numbers = #tpu.dot_dimension_numbers<[1], [0], [0], [1], [0, 0, 1, 1], [], []>} : vector<128x128xbf16>, vector<128x128xbf16>, vector<128x128xf32> -> vector<128x128xf32>
    %16 = vector.broadcast %4 : vector<128x1xf32> to vector<128x128xf32>
    %17 = arith.addf %15, %16 : vector<128x128xf32>
    %cst_9 = arith.constant 0.000000e+00 : f32
    %18 = vector.broadcast %cst_9 : f32 to vector<128x128xf32>
    %19 = arith.maximumf %17, %18 : vector<128x128xf32>
    %20 = arith.truncf %19 : vector<128x128xf32> to vector<128x128xbf16>
    %c0_10 = arith.constant 0 : index
    %c0_11 = arith.constant 0 : index
    %21 = vector.load %arg4[%c0_10, %c0_11] : memref<128x128xbf16, #tpu.memory_space<vmem>>, vector<128x128xbf16>
    %cst_12 = arith.constant dense<0.000000e+00> : vector<128x128xf32>
    %22 = tpu.matmul %21, %20, %cst_12 {dimension_numbers = #tpu.dot_dimension_numbers<[1], [0], [0], [1], [0, 0, 1, 1], [], []>} : vector<128x128xbf16>, vector<128x128xbf16>, vector<128x128xf32> -> vector<128x128xf32>
    %23 = vector.broadcast %5 : vector<128x1xf32> to vector<128x128xf32>
    %24 = arith.addf %22, %23 : vector<128x128xf32>
    %cst_13 = arith.constant 0.000000e+00 : f32
    %25 = vector.broadcast %cst_13 : f32 to vector<128x128xf32>
    %26 = arith.maximumf %24, %25 : vector<128x128xf32>
    %27 = vector.broadcast %6 : vector<128x1xf32> to vector<128x128xf32>
    %28 = arith.mulf %26, %27 : vector<128x128xf32>
    %cst_14 = arith.constant dense<0.000000e+00> : vector<128xf32>
    %29 = vector.multi_reduction <add>, %28, %cst_14 [0] : vector<128x128xf32> to vector<128xf32>
    %30 = vector.shape_cast %29 : vector<128xf32> to vector<1x128xf32>
    %c0_15 = arith.constant 0 : index
    %c0_16 = arith.constant 0 : index
    %31 = memref.load %arg6[%c0_15, %c0_16] : memref<1x1xf32, #tpu.memory_space<smem>>
    %32 = vector.broadcast %31 : f32 to vector<1x128xf32>
    %33 = arith.addf %30, %32 : vector<1x128xf32>
    %c0_17 = arith.constant 0 : index
    %c0_18 = arith.constant 0 : index
    %34 = vector.load %arg7[%c0_17, %c0_18] : memref<1x128xf32, #tpu.memory_space<vmem>>, vector<1x128xf32>
    tpu.vector_store %arg7[%c0_17, %c0_18], %33 {strides = array<i32>} : memref<1x128xf32, #tpu.memory_space<vmem>>, vector<1x128xf32>,
    return
  }
  func.func @transform_0(%arg0: i32) -> (i32, i32) {
    %c0_i32 = arith.constant 0 : i32
    %c0_i32_0 = arith.constant 0 : i32
    return %arg0, %c0_i32 : i32, i32
  }
  func.func @transform_1(%arg0: i32) -> (i32, i32) {
    %c0_i32 = arith.constant 0 : i32
    %c0_i32_0 = arith.constant 0 : i32
    %c0_i32_1 = arith.constant 0 : i32
    return %c0_i32, %c0_i32_0 : i32, i32
  }
  func.func @transform_2(%arg0: i32) -> (i32, i32) {
    %c0_i32 = arith.constant 0 : i32
    %c0_i32_0 = arith.constant 0 : i32
    %c0_i32_1 = arith.constant 0 : i32
    return %c0_i32, %c0_i32_0 : i32, i32
  }
  func.func @transform_3(%arg0: i32) -> (i32, i32) {
    %c0_i32 = arith.constant 0 : i32
    %c0_i32_0 = arith.constant 0 : i32
    %c0_i32_1 = arith.constant 0 : i32
    return %c0_i32, %c0_i32_0 : i32, i32
  }
  func.func @transform_4(%arg0: i32) -> (i32, i32) {
    %c0_i32 = arith.constant 0 : i32
    %c0_i32_0 = arith.constant 0 : i32
    %c0_i32_1 = arith.constant 0 : i32
    return %c0_i32, %c0_i32_0 : i32, i32
  }
  func.func @transform_5(%arg0: i32) -> (i32, i32) {
    %c0_i32 = arith.constant 0 : i32
    %c0_i32_0 = arith.constant 0 : i32
    %c0_i32_1 = arith.constant 0 : i32
    return %c0_i32, %c0_i32_0 : i32, i32
  }
  func.func @transform_6(%arg0: i32) -> (i32, i32) {
    %c0_i32 = arith.constant 0 : i32
    %c0_i32_0 = arith.constant 0 : i32
    return %c0_i32, %arg0 : i32, i32
  }
}

</mosaic_0001>

<llo_original>
// kernel: tpu_custom_call.1
$region0: #{tpu_custom_call.1}
  #allocation0 [shape = 'u32[]', space=smem, size = 0x4, offset = 0x4, fixed_abs, tag = 'smem constant byte address 0x4 - core index']
  #allocation1 [shape = 'u32[72,128]{1,0:T(1,128)}', space=vmem, size = 0x9000, scoped, tag = 'internal scratch']
  #allocation2 [shape = 'f32[1,1]{1,0:T(1,128)S(6)}', space=smem, size = 0x200, scoped, tag = 'scoped memory for tpu_custom_call.1']
  %s0 = inlined_call_operand.vmem [shape: f32[256,64], index: 0, kind: input, shape index: {}]
  %s1 = inlined_call_operand.vmem [shape: bf16[128,64], index: 1, kind: input, shape index: {}]
  %s2 = inlined_call_operand.vmem [shape: bf16[128,128], index: 2, kind: input, shape index: {}]
  %s3 = inlined_call_operand.vmem [shape: bf16[128,128], index: 3, kind: input, shape index: {}]
  %s4 = inlined_call_operand.vmem [shape: f32[128,4], index: 4, kind: input, shape index: {}]
  %s5 = inlined_call_operand.<no memory space> [shape: f32[1,1], index: 5, kind: input, shape index: {}]
  %s6 = inlined_call_operand.hbm [shape: f32[1,256], index: 6, kind: output, shape index: {}]
  %s7 = sld [smem:[#allocation0]]
  $region57: #{tpu_custom_call.1} parent=0
    _
  %s9 = ssub.s32 1, %s7
  %s10 = scalar_select 0, %s9, %s7
  %11 = sst [smem:[#allocation2]] %s5
  $region1: #{tpu_custom_call.1} parent=0
    #allocation3 [shape = 'u8[1024]{0}', space=vmem, size = 0x400, scoped, tag = 'output window, operand 0']
    #allocation4 [shape = 's32[2]{0}', space=sflag, size = 0x8, scoped, tag = 'scoped memory for tpu_custom_call.1']
    %12 = vsyncpa [#allocation4], 0
    %s13 = scalar_lea.sflag [#allocation4], 1
    %14 = vsyncpa %s13, 0
    loop: start=0, step=1, limit=4
    $region2: #{tpu_custom_call.1} parent=1 // loop_pre_header
      _
    $region3: #{tpu_custom_call.1} parent=1 // loop_header
      %s16 = sphi 0, %s20
      %p17 = scmp.ge.s32.totalorder %s16, 4
      %s26 = sphi 0, %s28
      %s29 = sphi 0, %s26
      %s30 = sphi 0, %s29
      %s46 = sphi 0, %s30
      %s50 = sphi 0, %s50
      %s52 = sphi 0, %s50
      %s53 = sphi 0, %s52
      %s67 = sphi 0, %s53
      %s71 = sphi 0, %s71
      %s73 = sphi 0, %s71
      %s74 = sphi 0, %s73
      %s88 = sphi 0, %s74
      %s92 = sphi 0, %s92
      %s94 = sphi 0, %s92
      %s95 = sphi 0, %s94
      %s109 = sphi 0, %s95
      %s113 = sphi 0, %s113
      %s115 = sphi 0, %s113
      %s116 = sphi 0, %s115
      %s130 = sphi 0, %s116
      %s134 = sphi 0, %s134
      %s136 = sphi 0, %s134
      %s137 = sphi 0, %s136
      %s151 = sphi 0, %s137
      %s157 = sphi 0, %s159
      %s160 = sphi 0, %s157
      %s161 = sphi 0, %s160
      %s177 = sphi 0, %s161
    $region4: #{tpu_custom_call.1} parent=1 // loop_header_branch
      %19 = sbr.rel (%p17) target = $region8
    $region5: #{tpu_custom_call.1} parent=1 // loop_body
      %s21 = ssub.s32 %s16, 1
      %s22 = ssub.s32 %s16, 2
      %s23 = sadd.s32 %s16, 1
      %s24 = ssub.s32 %s16, %s23
      %p25 = scmp.eq.s32.totalorder %s24, 0
      %s27 = sadd.s32 %s26, 1
      %s28 = scalar_select %p25, %s26, %s27
      %p31 = pneg %p25
      %p32 = scmp.eq.s32.totalorder %s16, 1
      %p33 = por %p31, %p32
      %p34 = scmp.ne.s32.totalorder %s26, %s29
      %p35 = scmp.eq.s32.totalorder %s16, 0
      %p36 = por %p34, %p35
      %p37 = scmp.ne.s32.totalorder %s26, %s29
      %p38 = scmp.eq.s32.totalorder %s21, 1
      %p39 = por %p37, %p38
      %p40 = scmp.ne.s32.totalorder %s29, %s30
      %p41 = scmp.eq.s32.totalorder %s21, 0
      %p42 = por %p40, %p41
      %p43 = scmp.ne.s32.totalorder %s29, %s30
      %p44 = scmp.eq.s32.totalorder %s22, 1
      %p45 = por %p43, %p44
      %p47 = scmp.ne.s32.totalorder %s30, %s46
      %p48 = scmp.eq.s32.totalorder %s22, 0
      %p49 = por %p47, %p48
      %s51 = sadd.s32 %s50, 1
      %p54 = scmp.eq.s32.totalorder %s16, 1
      %p55 = scmp.ne.s32.totalorder %s50, %s52
      %p56 = scmp.eq.s32.totalorder %s16, 0
      %p57 = por %p55, %p56
      %p58 = scmp.ne.s32.totalorder %s50, %s52
      %p59 = scmp.eq.s32.totalorder %s21, 1
      %p60 = por %p58, %p59
      %p61 = scmp.ne.s32.totalorder %s52, %s53
      %p62 = scmp.eq.s32.totalorder %s21, 0
      %p63 = por %p61, %p62
      %p64 = scmp.ne.s32.totalorder %s52, %s53
      %p65 = scmp.eq.s32.totalorder %s22, 1
      %p66 = por %p64, %p65
      %p68 = scmp.ne.s32.totalorder %s53, %s67
      %p69 = scmp.eq.s32.totalorder %s22, 0
      %p70 = por %p68, %p69
      %s72 = sadd.s32 %s71, 1
      %p75 = scmp.eq.s32.totalorder %s16, 1
      %p76 = scmp.ne.s32.totalorder %s71, %s73
      %p77 = scmp.eq.s32.totalorder %s16, 0
      %p78 = por %p76, %p77
      %p79 = scmp.ne.s32.totalorder %s71, %s73
      %p80 = scmp.eq.s32.totalorder %s21, 1
      %p81 = por %p79, %p80
      %p82 = scmp.ne.s32.totalorder %s73, %s74
      %p83 = scmp.eq.s32.totalorder %s21, 0
      %p84 = por %p82, %p83
      %p85 = scmp.ne.s32.totalorder %s73, %s74
      %p86 = scmp.eq.s32.totalorder %s22, 1
      %p87 = por %p85, %p86
      %p89 = scmp.ne.s32.totalorder %s74, %s88
      %p90 = scmp.eq.s32.totalorder %s22, 0
      %p91 = por %p89, %p90
      %s93 = sadd.s32 %s92, 1
      %p96 = scmp.eq.s32.totalorder %s16, 1
      %p97 = scmp.ne.s32.totalorder %s92, %s94
      %p98 = scmp.eq.s32.totalorder %s16, 0
      %p99 = por %p97, %p98
      %p100 = scmp.ne.s32.totalorder %s92, %s94
      %p101 = scmp.eq.s32.totalorder %s21, 1
      %p102 = por %p100, %p101
      %p103 = scmp.ne.s32.totalorder %s94, %s95
      %p104 = scmp.eq.s32.totalorder %s21, 0
      %p105 = por %p103, %p104
      %p106 = scmp.ne.s32.totalorder %s94, %s95
      %p107 = scmp.eq.s32.totalorder %s22, 1
      %p108 = por %p106, %p107
      %p110 = scmp.ne.s32.totalorder %s95, %s109
      %p111 = scmp.eq.s32.totalorder %s22, 0
      %p112 = por %p110, %p111
      %s114 = sadd.s32 %s113, 1
      %p117 = scmp.eq.s32.totalorder %s16, 1
      %p118 = scmp.ne.s32.totalorder %s113, %s115
      %p119 = scmp.eq.s32.totalorder %s16, 0
      %p120 = por %p118, %p119
      %p121 = scmp.ne.s32.totalorder %s113, %s115
      %p122 = scmp.eq.s32.totalorder %s21, 1
      %p123 = por %p121, %p122
      %p124 = scmp.ne.s32.totalorder %s115, %s116
      %p125 = scmp.eq.s32.totalorder %s21, 0
      %p126 = por %p124, %p125
      %p127 = scmp.ne.s32.totalorder %s115, %s116
      %p128 = scmp.eq.s32.totalorder %s22, 1
      %p129 = por %p127, %p128
      %p131 = scmp.ne.s32.totalorder %s116, %s130
      %p132 = scmp.eq.s32.totalorder %s22, 0
      %p133 = por %p131, %p132
      %s135 = sadd.s32 %s134, 1
      %p138 = scmp.eq.s32.totalorder %s16, 1
      %p139 = scmp.ne.s32.totalorder %s134, %s136
      %p140 = scmp.eq.s32.totalorder %s16, 0
      %p141 = por %p139, %p140
      %p142 = scmp.ne.s32.totalorder %s134, %s136
      %p143 = scmp.eq.s32.totalorder %s21, 1
      %p144 = por %p142, %p143
      %p145 = scmp.ne.s32.totalorder %s136, %s137
      %p146 = scmp.eq.s32.totalorder %s21, 0
      %p147 = por %p145, %p146
      %p148 = scmp.ne.s32.totalorder %s136, %s137
      %p149 = scmp.eq.s32.totalorder %s22, 1
      %p150 = por %p148, %p149
      %p152 = scmp.ne.s32.totalorder %s137, %s151
      %p153 = scmp.eq.s32.totalorder %s22, 0
      %p154 = por %p152, %p153
      %s155 = ssub.s32 %s16, %s23
      %p156 = scmp.eq.s32.totalorder %s155, 0
      %s158 = sadd.s32 %s157, 1
      %s159 = scalar_select %p156, %s157, %s158
      %p162 = pneg %p156
      %p163 = scmp.eq.s32.totalorder %s16, 1
      %p164 = por %p162, %p163
      %p165 = scmp.ne.s32.totalorder %s157, %s160
      %p166 = scmp.eq.s32.totalorder %s16, 0
      %p167 = por %p165, %p166
      %p168 = scmp.ne.s32.totalorder %s157, %s160
      %p169 = scmp.eq.s32.totalorder %s21, 1
      %p170 = por %p168, %p169
      %p171 = scmp.ne.s32.totalorder %s160, %s161
      %p172 = scmp.eq.s32.totalorder %s21, 0
      %p173 = por %p171, %p172
      %p174 = scmp.ne.s32.totalorder %s160, %s161
      %p175 = scmp.eq.s32.totalorder %s22, 1
      %p176 = por %p174, %p175
      %p178 = scmp.ne.s32.totalorder %s161, %s177
      %p179 = scmp.eq.s32.totalorder %s22, 0
      %p180 = por %p178, %p179
      %p181 = scmp.le.s32.totalorder 1, %s16
      %p182 = scmp.lt.s32.totalorder %s16, 3
      %p183 = pnand %p181, %p182
      %p184 = pneg %p183
      // Predicated region
      $region9: #{tpu_custom_call.1} parent=5 // pred_check
        _
      $region10: #{tpu_custom_call.1} parent=5 // pred_check_branch
        %186 = sbr.rel (%p183) target = $region12
      $region11: #{tpu_custom_call.1} parent=5 // pred_region
        %s187 = ssub.s32 %s16, 1
        // Predicated region
        $region13: #{tpu_custom_call.1} parent=11 // pred_check
          %p188 = pneg %p63
        $region14: #{tpu_custom_call.1} parent=11 // pred_check_branch
          %190 = sbr.rel (%p188) target = $region16
        $region15: #{tpu_custom_call.1} parent=11 // pred_region
          _
        $region16: #{tpu_custom_call.1} parent=11 // pred_fallthru
          _
        // Predicated region
        $region17: #{tpu_custom_call.1} parent=11 // pred_check
          %p191 = pneg %p84
        $region18: #{tpu_custom_call.1} parent=11 // pred_check_branch
          %193 = sbr.rel (%p191) target = $region20
        $region19: #{tpu_custom_call.1} parent=11 // pred_region
          _
        $region20: #{tpu_custom_call.1} parent=11 // pred_fallthru
          _
        // Predicated region
        $region21: #{tpu_custom_call.1} parent=11 // pred_check
          %p194 = pneg %p105
        $region22: #{tpu_custom_call.1} parent=11 // pred_check_branch
          %196 = sbr.rel (%p194) target = $region24
        $region23: #{tpu_custom_call.1} parent=11 // pred_region
          _
        $region24: #{tpu_custom_call.1} parent=11 // pred_fallthru
          _
        // Predicated region
        $region25: #{tpu_custom_call.1} parent=11 // pred_check
          %p197 = pneg %p126
        $region26: #{tpu_custom_call.1} parent=11 // pred_check_branch
          %199 = sbr.rel (%p197) target = $region28
        $region27: #{tpu_custom_call.1} parent=11 // pred_region
          _
        $region28: #{tpu_custom_call.1} parent=11 // pred_fallthru
          _
        // Predicated region
        $region29: #{tpu_custom_call.1} parent=11 // pred_check
          %p200 = pneg %p147
        $region30: #{tpu_custom_call.1} parent=11 // pred_check_branch
          %202 = sbr.rel (%p200) target = $region32
        $region31: #{tpu_custom_call.1} parent=11 // pred_region
          _
        $region32: #{tpu_custom_call.1} parent=11 // pred_fallthru
          _
      $region12: #{tpu_custom_call.1} parent=5 // pred_fallthru
        _
      %p203 = scmp.lt.s32.totalorder %s16, 2
      // Predicated region
      $region33: #{tpu_custom_call.1} parent=5 // pred_check
        %p204 = pneg %p203
      $region34: #{tpu_custom_call.1} parent=5 // pred_check_branch
        %206 = sbr.rel (%p204) target = $region36
      $region35: #{tpu_custom_call.1} parent=5 // pred_region
        // Predicated region
        $region37: #{tpu_custom_call.1} parent=35 // pred_check
          %p207 = pneg %p36
        $region38: #{tpu_custom_call.1} parent=35 // pred_check_branch
          %209 = sbr.rel (%p207) target = $region40
        $region39: #{tpu_custom_call.1} parent=35 // pred_region
          %s210 = smul.u32 16, %s16
          %p211 = scmp.lt.s32.totalorder %s210, 31
          %s212 = scalar_select %p211, %s210, 31
          %s213 = smul.addr %s212, 8
          %s214 = scalar_lea.vmem %s0, %s213
          %s215 = smul.u32 16, %s16
        $region40: #{tpu_custom_call.1} parent=35 // pred_fallthru
          _
      $region36: #{tpu_custom_call.1} parent=5 // pred_fallthru
        _
      %p216 = scmp.le.s32.totalorder 1, %s16
      %p217 = scmp.lt.s32.totalorder %s16, 3
      %p218 = pnand %p216, %p217
      %p219 = pneg %p218
      // Predicated region
      $region41: #{tpu_custom_call.1} parent=5 // pred_check
        _
      $region42: #{tpu_custom_call.1} parent=5 // pred_check_branch
        %221 = sbr.rel (%p218) target = $region44
      $region43: #{tpu_custom_call.1} parent=5 // pred_region
        %s222 = ssub.s32 %s16, 1
        %s223 = smul.u32 16, %s21
        %p224 = scmp.lt.s32.totalorder %s223, 31
        %s225 = scalar_select %p224, %s223, 31
        %s226 = smul.addr %s225, 8
        %s227 = scalar_lea.vmem %s0, %s226
        %p228 = pneg %p42
        %p229 = pneg %p39
        %p230 = pneg %p63
        %p231 = pneg %p60
        %p232 = pneg %p84
        %p233 = pneg %p81
        %p234 = pneg %p105
        %p235 = pneg %p102
        %p236 = pneg %p126
        %p237 = pneg %p123
        %p238 = pneg %p147
        %p239 = pneg %p144
        %p240 = pneg %p173
        %p241 = pneg %p170
        %s242 = sand.u32 %s160, 1
        %s243 = scalar_lea.sflag [#allocation4], %s242
        %s244 = sand.u32 %s160, 1
        %s245 = scalar_lea.vmem [#allocation3], %s244
        %s246 = smul.u32 16, %s21
        %p247 = scmp.lt.s32.totalorder %s246, 31
        %s248 = scalar_select %p247, %s246, 31
        %s249 = smul.addr %s248, 8
        %s250 = scalar_lea.vmem %s0, %s249
        %s251 = smul.u32 16, %s21
        %v252 = vld [vmem:[%s250] sm:$0xff]
        %v253 = vld [vmem:[%s250 + $0x8] sm:$0xff]
        %v254 = vld [vmem:[%s250 + $0x10] sm:$0xff]
        %v255 = vld [vmem:[%s250 + $0x18] sm:$0xff]
        %v256 = vld [vmem:[%s250 + $0x20] sm:$0xff]
        %v257 = vld [vmem:[%s250 + $0x28] sm:$0xff]
        %v258 = vld [vmem:[%s250 + $0x30] sm:$0xff]
        %v259 = vld [vmem:[%s250 + $0x38] sm:$0xff]
        %v260 = vld [vmem:[%s250 + $0x40] sm:$0xff]
        %v261 = vld [vmem:[%s250 + $0x48] sm:$0xff]
        %v262 = vld [vmem:[%s250 + $0x50] sm:$0xff]
        %v263 = vld [vmem:[%s250 + $0x58] sm:$0xff]
        %v264 = vld [vmem:[%s250 + $0x60] sm:$0xff]
        %v265 = vld [vmem:[%s250 + $0x68] sm:$0xff]
        %v266 = vld [vmem:[%s250 + $0x70] sm:$0xff]
        %v267 = vld [vmem:[%s250 + $0x78] sm:$0xff]
        %v268 = vpack.c.bf16 %v253, %v252
        %v269 = vpack.c.bf16 %v255, %v254
        %v270 = vpack.c.bf16 %v257, %v256
        %v271 = vpack.c.bf16 %v259, %v258
        %v272 = vpack.c.bf16 %v261, %v260
        %v273 = vpack.c.bf16 %v263, %v262
        %v274 = vpack.c.bf16 %v265, %v264
        %v275 = vpack.c.bf16 %v267, %v266
        %v276 = vld [vmem:[%s4] sm:$0xff]
        %v277 = vld [vmem:[%s4 + $0x8] sm:$0xff]
        %v278 = vld [vmem:[%s4 + $0x10] sm:$0xff]
        %v279 = vld [vmem:[%s4 + $0x18] sm:$0xff]
        %v280 = vld [vmem:[%s4 + $0x20] sm:$0xff]
        %v281 = vld [vmem:[%s4 + $0x28] sm:$0xff]
        %v282 = vld [vmem:[%s4 + $0x30] sm:$0xff]
        %v283 = vld [vmem:[%s4 + $0x38] sm:$0xff]
        %v284 = vld [vmem:[%s4 + $0x40] sm:$0xff]
        %v285 = vld [vmem:[%s4 + $0x48] sm:$0xff]
        %v286 = vld [vmem:[%s4 + $0x50] sm:$0xff]
        %v287 = vld [vmem:[%s4 + $0x58] sm:$0xff]
        %v288 = vld [vmem:[%s4 + $0x60] sm:$0xff]
        %v289 = vld [vmem:[%s4 + $0x68] sm:$0xff]
        %v290 = vld [vmem:[%s4 + $0x70] sm:$0xff]
        %v291 = vld [vmem:[%s4 + $0x78] sm:$0xff]
        %v292 = vld [vmem:[%s1] sm:$0xf]
        %v293 = vld [vmem:[%s1 + $0x4] sm:$0xf]
        %v294 = vld [vmem:[%s1 + $0x8] sm:$0xf]
        %v295 = vld [vmem:[%s1 + $0xc] sm:$0xf]
        %v296 = vld [vmem:[%s1 + $0x10] sm:$0xf]
        %v297 = vld [vmem:[%s1 + $0x14] sm:$0xf]
        %v298 = vld [vmem:[%s1 + $0x18] sm:$0xf]
        %v299 = vld [vmem:[%s1 + $0x1c] sm:$0xf]
        %v300 = vld [vmem:[%s1 + $0x20] sm:$0xf]
        %v301 = vld [vmem:[%s1 + $0x24] sm:$0xf]
        %v302 = vld [vmem:[%s1 + $0x28] sm:$0xf]
        %v303 = vld [vmem:[%s1 + $0x2c] sm:$0xf]
        %v304 = vld [vmem:[%s1 + $0x30] sm:$0xf]
        %v305 = vld [vmem:[%s1 + $0x34] sm:$0xf]
        %v306 = vld [vmem:[%s1 + $0x38] sm:$0xf]
        %v307 = vld [vmem:[%s1 + $0x3c] sm:$0xf]
        %309 = vset.pattern.permute.xlu0 0
        %310 = vperm.xlu0 %309, %v276
        %v311 = vpop.permute.xlu0 %310
        %314 = vset.pattern.permute.xlu0 0
        %315 = vperm.xlu0 %314, %v277
        %v316 = vpop.permute.xlu0 %315
        %319 = vset.pattern.permute.xlu0 0
        %320 = vperm.xlu0 %319, %v278
        %v321 = vpop.permute.xlu0 %320
        %324 = vset.pattern.permute.xlu0 0
        %325 = vperm.xlu0 %324, %v279
        %v326 = vpop.permute.xlu0 %325
        %329 = vset.pattern.permute.xlu0 0
        %330 = vperm.xlu0 %329, %v280
        %v331 = vpop.permute.xlu0 %330
        %334 = vset.pattern.permute.xlu0 0
        %335 = vperm.xlu0 %334, %v281
        %v336 = vpop.permute.xlu0 %335
        %339 = vset.pattern.permute.xlu0 0
        %340 = vperm.xlu0 %339, %v282
        %v341 = vpop.permute.xlu0 %340
        %344 = vset.pattern.permute.xlu0 0
        %345 = vperm.xlu0 %344, %v283
        %v346 = vpop.permute.xlu0 %345
        %349 = vset.pattern.permute.xlu0 0
        %350 = vperm.xlu0 %349, %v284
        %v351 = vpop.permute.xlu0 %350
        %354 = vset.pattern.permute.xlu0 0
        %355 = vperm.xlu0 %354, %v285
        %v356 = vpop.permute.xlu0 %355
        %359 = vset.pattern.permute.xlu0 0
        %360 = vperm.xlu0 %359, %v286
        %v361 = vpop.permute.xlu0 %360
        %364 = vset.pattern.permute.xlu0 0
        %365 = vperm.xlu0 %364, %v287
        %v366 = vpop.permute.xlu0 %365
        %369 = vset.pattern.permute.xlu0 0
        %370 = vperm.xlu0 %369, %v288
        %v371 = vpop.permute.xlu0 %370
        %374 = vset.pattern.permute.xlu0 0
        %375 = vperm.xlu0 %374, %v289
        %v376 = vpop.permute.xlu0 %375
        %379 = vset.pattern.permute.xlu0 0
        %380 = vperm.xlu0 %379, %v290
        %v381 = vpop.permute.xlu0 %380
        %384 = vset.pattern.permute.xlu0 0
        %385 = vperm.xlu0 %384, %v291
        %v386 = vpop.permute.xlu0 %385
        %v404 = vunpack.c.l.b16 %v292
        %v405 = vunpack.c.l.b16 %v293
        %v406 = vunpack.c.l.b16 %v294
        %v407 = vunpack.c.l.b16 %v295
        %v408 = vunpack.c.l.b16 %v296
        %v409 = vunpack.c.l.b16 %v297
        %v410 = vunpack.c.l.b16 %v298
        %v411 = vunpack.c.l.b16 %v299
        %v412 = vunpack.c.l.b16 %v300
        %v413 = vunpack.c.l.b16 %v301
        %v414 = vunpack.c.l.b16 %v302
        %v415 = vunpack.c.l.b16 %v303
        %v416 = vunpack.c.l.b16 %v304
        %v417 = vunpack.c.l.b16 %v305
        %v418 = vunpack.c.l.b16 %v306
        %v419 = vunpack.c.l.b16 %v307
        %v420 = vpack.c.b16 %v405, %v404
        %v421 = vpack.c.b16 %v407, %v406
        %v422 = vpack.c.b16 %v409, %v408
        %v423 = vpack.c.b16 %v411, %v410
        %v424 = vpack.c.b16 %v413, %v412
        %v425 = vpack.c.b16 %v415, %v414
        %v426 = vpack.c.b16 %v417, %v416
        %v427 = vpack.c.b16 %v419, %v418
        %vm428 = vcmask 523264
        %v430 = vsel %vm428, %v420, 0
        %v433 = vsel %vm428, %v421, 0
        %v436 = vsel %vm428, %v422, 0
        %v439 = vsel %vm428, %v423, 0
        %v442 = vsel %vm428, %v424, 0
        %v445 = vsel %vm428, %v425, 0
        %v448 = vsel %vm428, %v426, 0
        %v451 = vsel %vm428, %v427, 0
        %v454 = vsel %vm428, %v268, 0
        %v457 = vsel %vm428, %v269, 0
        %v460 = vsel %vm428, %v270, 0
        %v463 = vsel %vm428, %v271, 0
        %v466 = vsel %vm428, %v272, 0
        %v469 = vsel %vm428, %v273, 0
        %v472 = vsel %vm428, %v274, 0
        %v475 = vsel %vm428, %v275, 0
        %477 = vmatpush.bf16.xpose.msra.mxu0 %v475
        %478 = vmatpush.bf16.xpose.msra.mxu0 %v472
        %479 = vmatpush.bf16.xpose.msra.mxu0 %v469
        %480 = vmatpush.bf16.xpose.msra.mxu0 %v466
        %481 = vmatpush.bf16.xpose.msra.mxu0 %v463
        %482 = vmatpush.bf16.xpose.msra.mxu0 %v460
        %483 = vmatpush.bf16.xpose.msra.mxu0 %v457
        %484 = vmatpush.bf16.xpose.msra.mxu0 %v454
        %485 = vmatmul.bf16.gmra.mxu0 %v430
        %v486 = vpop.f32.mrf.mxu0
        %v487 = vadd.f32 %v311, %v486
        %v488 = vpop.f32.mrf.mxu0
        %v489 = vadd.f32 %v316, %v488
        %490 = vmatmul.bf16.gmra.mxu0 %v433
        %v491 = vpop.f32.mrf.mxu0
        %v492 = vadd.f32 %v321, %v491
        %v493 = vpop.f32.mrf.mxu0
        %v494 = vadd.f32 %v326, %v493
        %495 = vmatmul.bf16.gmra.mxu0 %v436
        %v496 = vpop.f32.mrf.mxu0
        %v497 = vadd.f32 %v331, %v496
        %v498 = vpop.f32.mrf.mxu0
        %v499 = vadd.f32 %v336, %v498
        %500 = vmatmul.bf16.gmra.mxu0 %v439
        %v501 = vpop.f32.mrf.mxu0
        %v502 = vadd.f32 %v341, %v501
        %v503 = vpop.f32.mrf.mxu0
        %v504 = vadd.f32 %v346, %v503
        %505 = vmatmul.bf16.gmra.mxu0 %v442
        %v506 = vpop.f32.mrf.mxu0
        %v507 = vadd.f32 %v351, %v506
        %v508 = vpop.f32.mrf.mxu0
        %v509 = vadd.f32 %v356, %v508
        %510 = vmatmul.bf16.gmra.mxu0 %v445
        %v511 = vpop.f32.mrf.mxu0
        %v512 = vadd.f32 %v361, %v511
        %v513 = vpop.f32.mrf.mxu0
        %v514 = vadd.f32 %v366, %v513
        %515 = vmatmul.bf16.gmra.mxu0 %v448
        %v516 = vpop.f32.mrf.mxu0
        %v517 = vadd.f32 %v371, %v516
        %v518 = vpop.f32.mrf.mxu0
        %v519 = vadd.f32 %v376, %v518
        %520 = vmatmul.bf16.gmra.mxu0 %v451
        %v521 = vpop.f32.mrf.mxu0
        %v522 = vadd.f32 %v381, %v521
        %v523 = vpop.f32.mrf.mxu0
        %v524 = vadd.f32 %v386, %v523
        %525 = vdwg.mxu0
        %v526 = vmax.f32 %v487, 0.0
        %v527 = vmax.f32 %v489, 0.0
        %v528 = vmax.f32 %v492, 0.0
        %v529 = vmax.f32 %v494, 0.0
        %v530 = vmax.f32 %v497, 0.0
        %v531 = vmax.f32 %v499, 0.0
        %v532 = vmax.f32 %v502, 0.0
        %v533 = vmax.f32 %v504, 0.0
        %v534 = vmax.f32 %v507, 0.0
        %v535 = vmax.f32 %v509, 0.0
        %v536 = vmax.f32 %v512, 0.0
        %v537 = vmax.f32 %v514, 0.0
        %v538 = vmax.f32 %v517, 0.0
        %v539 = vmax.f32 %v519, 0.0
        %v540 = vmax.f32 %v522, 0.0
        %v541 = vmax.f32 %v524, 0.0
        %v542 = vpack.c.bf16 %v527, %v526
        %v543 = vpack.c.bf16 %v529, %v528
        %v544 = vpack.c.bf16 %v531, %v530
        %v545 = vpack.c.bf16 %v533, %v532
        %v546 = vpack.c.bf16 %v535, %v534
        %v547 = vpack.c.bf16 %v537, %v536
        %v548 = vpack.c.bf16 %v539, %v538
        %v549 = vpack.c.bf16 %v541, %v540
        %v550 = vld [vmem:[%s2] sm:$0xf]
        %v551 = vld [vmem:[%s2 + $0x4] sm:$0xf]
        %v552 = vld [vmem:[%s2 + $0x8] sm:$0xf]
        %v553 = vld [vmem:[%s2 + $0xc] sm:$0xf]
        %v554 = vld [vmem:[%s2 + $0x10] sm:$0xf]
        %v555 = vld [vmem:[%s2 + $0x14] sm:$0xf]
        %v556 = vld [vmem:[%s2 + $0x18] sm:$0xf]
        %v557 = vld [vmem:[%s2 + $0x1c] sm:$0xf]
        %v558 = vld [vmem:[%s2 + $0x20] sm:$0xf]
        %v559 = vld [vmem:[%s2 + $0x24] sm:$0xf]
        %v560 = vld [vmem:[%s2 + $0x28] sm:$0xf]
        %v561 = vld [vmem:[%s2 + $0x2c] sm:$0xf]
        %v562 = vld [vmem:[%s2 + $0x30] sm:$0xf]
        %v563 = vld [vmem:[%s2 + $0x34] sm:$0xf]
        %v564 = vld [vmem:[%s2 + $0x38] sm:$0xf]
        %v565 = vld [vmem:[%s2 + $0x3c] sm:$0xf]
        %566 = vset.pattern.permute.xlu0 1
        %567 = vperm.xlu0 %566, %v276
        %v568 = vpop.permute.xlu0 %567
        %570 = vset.pattern.permute.xlu0 1
        %571 = vperm.xlu0 %570, %v277
        %v572 = vpop.permute.xlu0 %571
        %574 = vset.pattern.permute.xlu0 1
        %575 = vperm.xlu0 %574, %v278
        %v576 = vpop.permute.xlu0 %575
        %578 = vset.pattern.permute.xlu0 1
        %579 = vperm.xlu0 %578, %v279
        %v580 = vpop.permute.xlu0 %579
        %582 = vset.pattern.permute.xlu0 1
        %583 = vperm.xlu0 %582, %v280
        %v584 = vpop.permute.xlu0 %583
        %586 = vset.pattern.permute.xlu0 1
        %587 = vperm.xlu0 %586, %v281
        %v588 = vpop.permute.xlu0 %587
        %590 = vset.pattern.permute.xlu0 1
        %591 = vperm.xlu0 %590, %v282
        %v592 = vpop.permute.xlu0 %591
        %594 = vset.pattern.permute.xlu0 1
        %595 = vperm.xlu0 %594, %v283
        %v596 = vpop.permute.xlu0 %595
        %598 = vset.pattern.permute.xlu0 1
        %599 = vperm.xlu0 %598, %v284
        %v600 = vpop.permute.xlu0 %599
        %602 = vset.pattern.permute.xlu0 1
        %603 = vperm.xlu0 %602, %v285
        %v604 = vpop.permute.xlu0 %603
        %606 = vset.pattern.permute.xlu0 1
        %607 = vperm.xlu0 %606, %v286
        %v608 = vpop.permute.xlu0 %607
        %610 = vset.pattern.permute.xlu0 1
        %611 = vperm.xlu0 %610, %v287
        %v612 = vpop.permute.xlu0 %611
        %614 = vset.pattern.permute.xlu0 1
        %615 = vperm.xlu0 %614, %v288
        %v616 = vpop.permute.xlu0 %615
        %618 = vset.pattern.permute.xlu0 1
        %619 = vperm.xlu0 %618, %v289
        %v620 = vpop.permute.xlu0 %619
        %622 = vset.pattern.permute.xlu0 1
        %623 = vperm.xlu0 %622, %v290
        %v624 = vpop.permute.xlu0 %623
        %626 = vset.pattern.permute.xlu0 1
        %627 = vperm.xlu0 %626, %v291
        %v628 = vpop.permute.xlu0 %627
        %v646 = vunpack.c.l.b16 %v550
        %v647 = vunpack.c.l.b16 %v551
        %v648 = vunpack.c.l.b16 %v552
        %v649 = vunpack.c.l.b16 %v553
        %v650 = vunpack.c.l.b16 %v554
        %v651 = vunpack.c.l.b16 %v555
        %v652 = vunpack.c.l.b16 %v556
        %v653 = vunpack.c.l.b16 %v557
        %v654 = vunpack.c.l.b16 %v558
        %v655 = vunpack.c.l.b16 %v559
        %v656 = vunpack.c.l.b16 %v560
        %v657 = vunpack.c.l.b16 %v561
        %v658 = vunpack.c.l.b16 %v562
        %v659 = vunpack.c.l.b16 %v563
        %v660 = vunpack.c.l.b16 %v564
        %v661 = vunpack.c.l.b16 %v565
        %v662 = vpack.c.b16 %v647, %v646
        %v663 = vpack.c.b16 %v649, %v648
        %v664 = vpack.c.b16 %v651, %v650
        %v665 = vpack.c.b16 %v653, %v652
        %v666 = vpack.c.b16 %v655, %v654
        %v667 = vpack.c.b16 %v657, %v656
        %v668 = vpack.c.b16 %v659, %v658
        %v669 = vpack.c.b16 %v661, %v660
        %678 = vmatpush.bf16.msra.mxu0 %v549
        %679 = vmatpush.bf16.msra.mxu0 %v548
        %680 = vmatpush.bf16.msra.mxu0 %v547
        %681 = vmatpush.bf16.msra.mxu0 %v546
        %682 = vmatpush.bf16.msra.mxu0 %v545
        %683 = vmatpush.bf16.msra.mxu0 %v544
        %684 = vmatpush.bf16.msra.mxu0 %v543
        %685 = vmatpush.bf16.msra.mxu0 %v542
        %686 = vmatmul.bf16.gmra.mxu0 %v662
        %v687 = vpop.f32.mrf.mxu0
        %v688 = vadd.f32 %v568, %v687
        %v689 = vpop.f32.mrf.mxu0
        %v690 = vadd.f32 %v572, %v689
        %691 = vmatmul.bf16.gmra.mxu0 %v663
        %v692 = vpop.f32.mrf.mxu0
        %v693 = vadd.f32 %v576, %v692
        %v694 = vpop.f32.mrf.mxu0
        %v695 = vadd.f32 %v580, %v694
        %696 = vmatmul.bf16.gmra.mxu0 %v664
        %v697 = vpop.f32.mrf.mxu0
        %v698 = vadd.f32 %v584, %v697
        %v699 = vpop.f32.mrf.mxu0
        %v700 = vadd.f32 %v588, %v699
        %701 = vmatmul.bf16.gmra.mxu0 %v665
        %v702 = vpop.f32.mrf.mxu0
        %v703 = vadd.f32 %v592, %v702
        %v704 = vpop.f32.mrf.mxu0
        %v705 = vadd.f32 %v596, %v704
        %706 = vmatmul.bf16.gmra.mxu0 %v666
        %v707 = vpop.f32.mrf.mxu0
        %v708 = vadd.f32 %v600, %v707
        %v709 = vpop.f32.mrf.mxu0
        %v710 = vadd.f32 %v604, %v709
        %711 = vmatmul.bf16.gmra.mxu0 %v667
        %v712 = vpop.f32.mrf.mxu0
        %v713 = vadd.f32 %v608, %v712
        %v714 = vpop.f32.mrf.mxu0
        %v715 = vadd.f32 %v612, %v714
        %716 = vmatmul.bf16.gmra.mxu0 %v668
        %v717 = vpop.f32.mrf.mxu0
        %v718 = vadd.f32 %v616, %v717
        %v719 = vpop.f32.mrf.mxu0
        %v720 = vadd.f32 %v620, %v719
        %721 = vmatmul.bf16.gmra.mxu0 %v669
        %v722 = vpop.f32.mrf.mxu0
        %v723 = vadd.f32 %v624, %v722
        %v724 = vpop.f32.mrf.mxu0
        %v725 = vadd.f32 %v628, %v724
        %726 = vdwg.mxu0
        %v727 = vmax.f32 %v688, 0.0
        %v728 = vmax.f32 %v690, 0.0
        %v729 = vmax.f32 %v693, 0.0
        %v730 = vmax.f32 %v695, 0.0
        %v731 = vmax.f32 %v698, 0.0
        %v732 = vmax.f32 %v700, 0.0
        %v733 = vmax.f32 %v703, 0.0
        %v734 = vmax.f32 %v705, 0.0
        %v735 = vmax.f32 %v708, 0.0
        %v736 = vmax.f32 %v710, 0.0
        %v737 = vmax.f32 %v713, 0.0
        %v738 = vmax.f32 %v715, 0.0
        %v739 = vmax.f32 %v718, 0.0
        %v740 = vmax.f32 %v720, 0.0
        %v741 = vmax.f32 %v723, 0.0
        %v742 = vmax.f32 %v725, 0.0
        %v743 = vpack.c.bf16 %v728, %v727
        %v744 = vpack.c.bf16 %v730, %v729
        %v745 = vpack.c.bf16 %v732, %v731
        %v746 = vpack.c.bf16 %v734, %v733
        %v747 = vpack.c.bf16 %v736, %v735
        %v748 = vpack.c.bf16 %v738, %v737
        %v749 = vpack.c.bf16 %v740, %v739
        %v750 = vpack.c.bf16 %v742, %v741
        %v751 = vld [vmem:[%s3] sm:$0xf]
        %v752 = vld [vmem:[%s3 + $0x4] sm:$0xf]
        %v753 = vld [vmem:[%s3 + $0x8] sm:$0xf]
        %v754 = vld [vmem:[%s3 + $0xc] sm:$0xf]
        %v755 = vld [vmem:[%s3 + $0x10] sm:$0xf]
        %v756 = vld [vmem:[%s3 + $0x14] sm:$0xf]
        %v757 = vld [vmem:[%s3 + $0x18] sm:$0xf]
        %v758 = vld [vmem:[%s3 + $0x1c] sm:$0xf]
        %v759 = vld [vmem:[%s3 + $0x20] sm:$0xf]
        %v760 = vld [vmem:[%s3 + $0x24] sm:$0xf]
        %v761 = vld [vmem:[%s3 + $0x28] sm:$0xf]
        %v762 = vld [vmem:[%s3 + $0x2c] sm:$0xf]
        %v763 = vld [vmem:[%s3 + $0x30] sm:$0xf]
        %v764 = vld [vmem:[%s3 + $0x34] sm:$0xf]
        %v765 = vld [vmem:[%s3 + $0x38] sm:$0xf]
        %v766 = vld [vmem:[%s3 + $0x3c] sm:$0xf]
        %767 = vset.pattern.permute.xlu0 2
        %768 = vperm.xlu0 %767, %v276
        %v769 = vpop.permute.xlu0 %768
        %771 = vset.pattern.permute.xlu0 2
        %772 = vperm.xlu0 %771, %v277
        %v773 = vpop.permute.xlu0 %772
        %775 = vset.pattern.permute.xlu0 2
        %776 = vperm.xlu0 %775, %v278
        %v777 = vpop.permute.xlu0 %776
        %779 = vset.pattern.permute.xlu0 2
        %780 = vperm.xlu0 %779, %v279
        %v781 = vpop.permute.xlu0 %780
        %783 = vset.pattern.permute.xlu0 2
        %784 = vperm.xlu0 %783, %v280
        %v785 = vpop.permute.xlu0 %784
        %787 = vset.pattern.permute.xlu0 2
        %788 = vperm.xlu0 %787, %v281
        %v789 = vpop.permute.xlu0 %788
        %791 = vset.pattern.permute.xlu0 2
        %792 = vperm.xlu0 %791, %v282
        %v793 = vpop.permute.xlu0 %792
        %795 = vset.pattern.permute.xlu0 2
        %796 = vperm.xlu0 %795, %v283
        %v797 = vpop.permute.xlu0 %796
        %799 = vset.pattern.permute.xlu0 2
        %800 = vperm.xlu0 %799, %v284
        %v801 = vpop.permute.xlu0 %800
        %803 = vset.pattern.permute.xlu0 2
        %804 = vperm.xlu0 %803, %v285
        %v805 = vpop.permute.xlu0 %804
        %807 = vset.pattern.permute.xlu0 2
        %808 = vperm.xlu0 %807, %v286
        %v809 = vpop.permute.xlu0 %808
        %811 = vset.pattern.permute.xlu0 2
        %812 = vperm.xlu0 %811, %v287
        %v813 = vpop.permute.xlu0 %812
        %815 = vset.pattern.permute.xlu0 2
        %816 = vperm.xlu0 %815, %v288
        %v817 = vpop.permute.xlu0 %816
        %819 = vset.pattern.permute.xlu0 2
        %820 = vperm.xlu0 %819, %v289
        %v821 = vpop.permute.xlu0 %820
        %823 = vset.pattern.permute.xlu0 2
        %824 = vperm.xlu0 %823, %v290
        %v825 = vpop.permute.xlu0 %824
        %827 = vset.pattern.permute.xlu0 2
        %828 = vperm.xlu0 %827, %v291
        %v829 = vpop.permute.xlu0 %828
        %v847 = vunpack.c.l.b16 %v751
        %v848 = vunpack.c.l.b16 %v752
        %v849 = vunpack.c.l.b16 %v753
        %v850 = vunpack.c.l.b16 %v754
        %v851 = vunpack.c.l.b16 %v755
        %v852 = vunpack.c.l.b16 %v756
        %v853 = vunpack.c.l.b16 %v757
        %v854 = vunpack.c.l.b16 %v758
        %v855 = vunpack.c.l.b16 %v759
        %v856 = vunpack.c.l.b16 %v760
        %v857 = vunpack.c.l.b16 %v761
        %v858 = vunpack.c.l.b16 %v762
        %v859 = vunpack.c.l.b16 %v763
        %v860 = vunpack.c.l.b16 %v764
        %v861 = vunpack.c.l.b16 %v765
        %v862 = vunpack.c.l.b16 %v766
        %v863 = vpack.c.b16 %v848, %v847
        %v864 = vpack.c.b16 %v850, %v849
        %v865 = vpack.c.b16 %v852, %v851
        %v866 = vpack.c.b16 %v854, %v853
        %v867 = vpack.c.b16 %v856, %v855
        %v868 = vpack.c.b16 %v858, %v857
        %v869 = vpack.c.b16 %v860, %v859
        %v870 = vpack.c.b16 %v862, %v861
        %879 = vmatpush.bf16.msra.mxu0 %v750
        %880 = vmatpush.bf16.msra.mxu0 %v749
        %881 = vmatpush.bf16.msra.mxu0 %v748
        %882 = vmatpush.bf16.msra.mxu0 %v747
        %883 = vmatpush.bf16.msra.mxu0 %v746
        %884 = vmatpush.bf16.msra.mxu0 %v745
        %885 = vmatpush.bf16.msra.mxu0 %v744
        %886 = vmatpush.bf16.msra.mxu0 %v743
        %887 = vmatmul.bf16.gmra.mxu0 %v863
        %v888 = vpop.f32.mrf.mxu0
        %v889 = vadd.f32 %v769, %v888
        %v890 = vpop.f32.mrf.mxu0
        %v891 = vadd.f32 %v773, %v890
        %892 = vmatmul.bf16.gmra.mxu0 %v864
        %v893 = vpop.f32.mrf.mxu0
        %v894 = vadd.f32 %v777, %v893
        %v895 = vpop.f32.mrf.mxu0
        %v896 = vadd.f32 %v781, %v895
        %897 = vmatmul.bf16.gmra.mxu0 %v865
        %v898 = vpop.f32.mrf.mxu0
        %v899 = vadd.f32 %v785, %v898
        %v900 = vpop.f32.mrf.mxu0
        %v901 = vadd.f32 %v789, %v900
        %902 = vmatmul.bf16.gmra.mxu0 %v866
        %v903 = vpop.f32.mrf.mxu0
        %v904 = vadd.f32 %v793, %v903
        %v905 = vpop.f32.mrf.mxu0
        %v906 = vadd.f32 %v797, %v905
        %907 = vmatmul.bf16.gmra.mxu0 %v867
        %v908 = vpop.f32.mrf.mxu0
        %v909 = vadd.f32 %v801, %v908
        %v910 = vpop.f32.mrf.mxu0
        %v911 = vadd.f32 %v805, %v910
        %912 = vmatmul.bf16.gmra.mxu0 %v868
        %v913 = vpop.f32.mrf.mxu0
        %v914 = vadd.f32 %v809, %v913
        %v915 = vpop.f32.mrf.mxu0
        %v916 = vadd.f32 %v813, %v915
        %917 = vmatmul.bf16.gmra.mxu0 %v869
        %v918 = vpop.f32.mrf.mxu0
        %v919 = vadd.f32 %v817, %v918
        %v920 = vpop.f32.mrf.mxu0
        %v921 = vadd.f32 %v821, %v920
        %922 = vmatmul.bf16.gmra.mxu0 %v870
        %v923 = vpop.f32.mrf.mxu0
        %v924 = vadd.f32 %v825, %v923
        %v925 = vpop.f32.mrf.mxu0
        %v926 = vadd.f32 %v829, %v925
        %927 = vdwg.mxu0
        %v928 = vmax.f32 %v889, 0.0
        %v929 = vmax.f32 %v891, 0.0
        %v930 = vmax.f32 %v894, 0.0
        %v931 = vmax.f32 %v896, 0.0
        %v932 = vmax.f32 %v899, 0.0
        %v933 = vmax.f32 %v901, 0.0
        %v934 = vmax.f32 %v904, 0.0
        %v935 = vmax.f32 %v906, 0.0
        %v936 = vmax.f32 %v909, 0.0
        %v937 = vmax.f32 %v911, 0.0
        %v938 = vmax.f32 %v914, 0.0
        %v939 = vmax.f32 %v916, 0.0
        %v940 = vmax.f32 %v919, 0.0
        %v941 = vmax.f32 %v921, 0.0
        %v942 = vmax.f32 %v924, 0.0
        %v943 = vmax.f32 %v926, 0.0
        %944 = vset.pattern.permute.xlu0 3
        %945 = vperm.xlu0 %944, %v276
        %v946 = vpop.permute.xlu0 %945
        %948 = vset.pattern.permute.xlu0 3
        %949 = vperm.xlu0 %948, %v277
        %v950 = vpop.permute.xlu0 %949
        %952 = vset.pattern.permute.xlu0 3
        %953 = vperm.xlu0 %952, %v278
        %v954 = vpop.permute.xlu0 %953
        %956 = vset.pattern.permute.xlu0 3
        %957 = vperm.xlu0 %956, %v279
        %v958 = vpop.permute.xlu0 %957
        %960 = vset.pattern.permute.xlu0 3
        %961 = vperm.xlu0 %960, %v280
        %v962 = vpop.permute.xlu0 %961
        %964 = vset.pattern.permute.xlu0 3
        %965 = vperm.xlu0 %964, %v281
        %v966 = vpop.permute.xlu0 %965
        %968 = vset.pattern.permute.xlu0 3
        %969 = vperm.xlu0 %968, %v282
        %v970 = vpop.permute.xlu0 %969
        %972 = vset.pattern.permute.xlu0 3
        %973 = vperm.xlu0 %972, %v283
        %v974 = vpop.permute.xlu0 %973
        %976 = vset.pattern.permute.xlu0 3
        %977 = vperm.xlu0 %976, %v284
        %v978 = vpop.permute.xlu0 %977
        %980 = vset.pattern.permute.xlu0 3
        %981 = vperm.xlu0 %980, %v285
        %v982 = vpop.permute.xlu0 %981
        %984 = vset.pattern.permute.xlu0 3
        %985 = vperm.xlu0 %984, %v286
        %v986 = vpop.permute.xlu0 %985
        %988 = vset.pattern.permute.xlu0 3
        %989 = vperm.xlu0 %988, %v287
        %v990 = vpop.permute.xlu0 %989
        %992 = vset.pattern.permute.xlu0 3
        %993 = vperm.xlu0 %992, %v288
        %v994 = vpop.permute.xlu0 %993
        %996 = vset.pattern.permute.xlu0 3
        %997 = vperm.xlu0 %996, %v289
        %v998 = vpop.permute.xlu0 %997
        %1000 = vset.pattern.permute.xlu0 3
        %1001 = vperm.xlu0 %1000, %v290
        %v1002 = vpop.permute.xlu0 %1001
        %1004 = vset.pattern.permute.xlu0 3
        %1005 = vperm.xlu0 %1004, %v291
        %v1006 = vpop.permute.xlu0 %1005
        %v1008 = vmul.f32 %v928, %v946
        %v1009 = vmul.f32 %v929, %v950
        %v1010 = vmul.f32 %v930, %v954
        %v1011 = vmul.f32 %v931, %v958
        %v1012 = vmul.f32 %v932, %v962
        %v1013 = vmul.f32 %v933, %v966
        %v1014 = vmul.f32 %v934, %v970
        %v1015 = vmul.f32 %v935, %v974
        %v1016 = vmul.f32 %v936, %v978
        %v1017 = vmul.f32 %v937, %v982
        %v1018 = vmul.f32 %v938, %v986
        %v1019 = vmul.f32 %v939, %v990
        %v1020 = vmul.f32 %v940, %v994
        %v1021 = vmul.f32 %v941, %v998
        %v1022 = vmul.f32 %v942, %v1002
        %v1023 = vmul.f32 %v943, %v1006
        %v1024 = vadd.f32 %v1008, %v1009
        %v1025 = vadd.f32 %v1024, %v1010
        %v1026 = vadd.f32 %v1025, %v1011
        %v1027 = vadd.f32 %v1026, %v1012
        %v1028 = vadd.f32 %v1027, %v1013
        %v1029 = vadd.f32 %v1028, %v1014
        %v1030 = vadd.f32 %v1029, %v1015
        %v1031 = vadd.f32 %v1030, %v1016
        %v1032 = vadd.f32 %v1031, %v1017
        %v1033 = vadd.f32 %v1032, %v1018
        %v1034 = vadd.f32 %v1033, %v1019
        %v1035 = vadd.f32 %v1034, %v1020
        %v1036 = vadd.f32 %v1035, %v1021
        %v1037 = vadd.f32 %v1036, %v1022
        %v1038 = vadd.f32 %v1037, %v1023
        %v1039 = vrot.slane %v1038, 4
        %v1040 = vadd.f32 %v1038, %v1039
        %v1041 = vrot.slane %v1040, 2
        %v1042 = vadd.f32 %v1040, %v1041
        %v1043 = vrot.slane %v1042, 1
        %v1044 = vadd.f32 %v1042, %v1043
        %s1045 = sld [smem:[#allocation2]]
        %v1046 = vstv %s1045
        %v1047 = vadd.f32 %v1044, %v1046
        %1048 = vst [vmem:[%s245] sm:$0x1] %v1047
        %s1049 = sand.u32 %s160, 1
        %s1050 = scalar_lea.sflag [#allocation4], %s1049
        %s1051 = sand.u32 %s160, 1
        %s1052 = scalar_lea.vmem [#allocation3], %s1051
        // Predicated region
        $region45: #{tpu_custom_call.1} parent=43 // pred_check
          %p1053 = pneg %p170
        $region46: #{tpu_custom_call.1} parent=43 // pred_check_branch
          %1055 = sbr.rel (%p1053) target = $region48
        $region47: #{tpu_custom_call.1} parent=43 // pred_region
          %1057 = vsyncadd %s1050, 0
          %s1058 = scalar_lea.hbm %s6, %s21
          %s1060 = sshll.u32 %s1052, 4
          %s1061 = int_to_ptr.vmem [resolvable:$true] %s1060
          %s1062 = sshll.u32 %s1058, 4
          %s1063 = int_to_ptr.hbm [resolvable:$true] %s1062
          %1065 = dma.vmem_to_hbm [thread:$0]  %s1061, 16, %s1063, %s1050
        $region48: #{tpu_custom_call.1} parent=43 // pred_fallthru
          _
      $region44: #{tpu_custom_call.1} parent=5 // pred_fallthru
        _
      %p1066 = scmp.le.s32.totalorder 2, %s16
      // Predicated region
      $region49: #{tpu_custom_call.1} parent=5 // pred_check
        %p1067 = pneg %p1066
      $region50: #{tpu_custom_call.1} parent=5 // pred_check_branch
        %1069 = sbr.rel (%p1067) target = $region52
      $region51: #{tpu_custom_call.1} parent=5 // pred_region
        %s1070 = ssub.s32 %s16, 2
        // Predicated region
        $region53: #{tpu_custom_call.1} parent=51 // pred_check
          %p1071 = pneg %p176
        $region54: #{tpu_custom_call.1} parent=51 // pred_check_branch
          %1073 = sbr.rel (%p1071) target = $region56
        $region55: #{tpu_custom_call.1} parent=51 // pred_region
          %s1074 = sand.u32 %s161, 1
          %s1075 = scalar_lea.sflag [#allocation4], %s1074
          %s1076 = sand.u32 %s161, 1
          %s1077 = scalar_lea.vmem [#allocation3], %s1076
          %1079 = dma.done %s1075, 16
        $region56: #{tpu_custom_call.1} parent=51 // pred_fallthru
          _
      $region52: #{tpu_custom_call.1} parent=5 // pred_fallthru
        _
    $region6: #{tpu_custom_call.1} parent=1 // loop_footer
      %s20 = sadd.s32 1, %s16
    $region7: #{tpu_custom_call.1} parent=1 // loop_footer_branch
      %15 = sbr.rel target = $region3
    $region8: #{tpu_custom_call.1} parent=1 // loop_exit
      _
    %1080 = vsyncpa [#allocation4], 1
    %s1081 = scalar_lea.sflag [#allocation4], 1
    %1082 = vsyncpa %s1081, 1

</llo_original>
